<compile_context>
chip_gen: v7x
topology: tpu7x:2x2x1
jax: 0.10.0
libtpu: 0.0.40
codegen_flags: <defaults>
</compile_context>

<pallas_src>
import jax
import jax.numpy as jnp
from jax.experimental import pallas as pl
from jax.experimental.pallas import tpu as pltpu


# ---------------------------------------------------------------------------
# Glue: PyTorch-style bilinear interpolation (align_corners=False).
# TODO(synk): gather-based bilinear resize has no clean Pallas equivalent;
#             kept in plain JAX.
# ---------------------------------------------------------------------------
def _bilinear_resize_nchw(x, out_h, out_w):
    n, c, in_h, in_w = x.shape
    x = x.astype(jnp.float32)
    scale_h = in_h / out_h
    scale_w = in_w / out_w
    src_y = jnp.maximum((jnp.arange(out_h, dtype=jnp.float32) + 0.5) * scale_h - 0.5, 0.0)
    src_x = jnp.maximum((jnp.arange(out_w, dtype=jnp.float32) + 0.5) * scale_w - 0.5, 0.0)
    y0 = jnp.floor(src_y).astype(jnp.int32)
    x0 = jnp.floor(src_x).astype(jnp.int32)
    y1 = jnp.minimum(y0 + 1, in_h - 1)
    x1 = jnp.minimum(x0 + 1, in_w - 1)
    wy1 = src_y - y0.astype(jnp.float32)
    wy0 = 1.0 - wy1
    wx1 = src_x - x0.astype(jnp.float32)
    wx0 = 1.0 - wx1
    top = jnp.take(x, y0, axis=2)
    bot = jnp.take(x, y1, axis=2)
    tl = jnp.take(top, x0, axis=3)
    tr = jnp.take(top, x1, axis=3)
    bl = jnp.take(bot, x0, axis=3)
    br = jnp.take(bot, x1, axis=3)
    wy0 = wy0[None, None, :, None]
    wy1 = wy1[None, None, :, None]
    wx0 = wx0[None, None, None, :]
    wx1 = wx1[None, None, None, :]
    return tl * wy0 * wx0 + tr * wy0 * wx1 + bl * wy1 * wx0 + br * wy1 * wx1


# ---------------------------------------------------------------------------
# VMEM budgeting helpers.
# ---------------------------------------------------------------------------
def _vmem_capacity_bytes():
    try:
        cap = int(pltpu.get_tpu_info().vmem_capacity_bytes)
        if cap >= 16 * 1024 * 1024:
            return cap
    except Exception:
        pass
    return 64 * 1024 * 1024  # conservative (v7x-sized) default


def _fused_block_bytes(f, C, F, hw_p):
    per = 4 * hw_p
    blocks = (f * C + 1 + F + (2 * C + 1)) * per * 2      # double-buffered I/O blocks
    temps = (3 * C + 4 * F + 8) * per                     # in-kernel temporaries (estimate)
    return blocks + temps


def _two_phase_bytes(f, C, F, t):
    per = 4 * t
    blocks = (f * C + 1 + F + (2 * C + 1)) * per * 2      # worst of the two phases, dbl-buffered
    scratch = 2 * F * per                                 # phase-1 per-lane accumulators
    temps = (3 * C + 4 * F + 8) * per
    small = 6 * F * 128 * 4                               # (1,F,128) gs/num/den buffers
    return blocks + scratch + temps + small


def _pick_hw_tile(hw_p, f, C, F, budget):
    """Largest multiple-of-128 divisor of hw_p whose footprint fits `budget`."""
    best = 128
    best_bytes = _two_phase_bytes(f, C, F, 128)
    t = 128
    while t <= hw_p:
        if hw_p % t == 0:
            bb = _two_phase_bytes(f, C, F, t)
            if bb <= budget:
                best, best_bytes = t, bb
        t += 128
    return best, best_bytes


# ---------------------------------------------------------------------------
# Fused kernel (primary path): grid = (b,), whole (f, C, hw) slab per step.
#   cf_ref : (1, f, C, HW)   vt_ref : (1, 1, HW)   vr_ref : (1, F, HW)
#   out_ref: (1, 2C+1, HW)   rows [0:C]=feat0, [C:2C]=c_out, [2C]=c_mask
# ---------------------------------------------------------------------------
def _cm_fused_kernel(cf_ref, vt_ref, vr_ref, out_ref):
    C = cf_ref.shape[2]
    F = vr_ref.shape[1]

    feat0 = cf_ref[0, 0]                       # (C, HW)
    vt = vt_ref[0]                             # (1, HW)
    vr = vr_ref[0]                             # (F, HW)
    vmap = vt * vr                             # (F, HW)  mask product hoisted out of loops

    # ---- phase 1 (in VMEM): per-frame masked cosine-similarity scalar gs_r ----
    gs = []
    for r in range(F):
        featr = cf_ref[0, r + 1]                                    # (C, HW)
        s = jnp.sum(featr * feat0, axis=0, keepdims=True)           # (1, HW) sublane reduce
        num = jnp.sum(s * vmap[r:r + 1, :], axis=-1, keepdims=True)  # (1, 1)
        den = jnp.sum(vmap[r:r + 1, :], axis=-1, keepdims=True)      # (1, 1)
        den_zero = den < 1e-4
        den = den + den_zero.astype(jnp.float32)
        gs_r = jnp.where(den_zero, jnp.float32(0.0), num / (den * jnp.float32(C)))
        gs.append(gs_r)                                             # (1, 1)

    # ---- phase 2: masked softmax over frames (channel-constant) + aggregation ----
    # gs_r is a per-frame scalar -> exp(gs_r*vr_r - m)*vr_r == exp(gs_r)*exp(-m)*vr_r
    m = gs[0] * vr[0:1, :]
    for r in range(1, F):
        m = jnp.maximum(m, gs[r] * vr[r:r + 1, :])                  # (1, HW)
    e_neg_m = jnp.exp(-m)                                           # (1, HW)  one EUP pass

    exps = []
    sums = None
    for r in range(F):
        e_r = (jnp.exp(gs[r]) * e_neg_m) * vr[r:r + 1, :]           # (1, HW)
        exps.append(e_r)
        sums = e_r if sums is None else sums + e_r
    sums = sums + (sums < 1e-4).astype(jnp.float32)
    inv_sums = 1.0 / sums                                           # exact (kernel is HBM-bound)

    cm0 = exps[0] * inv_sums
    acc = cf_ref[0, 1] * cm0                                        # (C, HW)
    cmatch_sum = cm0                                                # (1, HW)
    for r in range(1, F):
        cm_r = exps[r] * inv_sums
        acc = acc + cf_ref[0, r + 1] * cm_r
        cmatch_sum = cmatch_sum + cm_r

    out_ref[0, 0:C, :] = feat0
    out_ref[0, C:2 * C, :] = acc
    out_ref[0, 2 * C:2 * C + 1, :] = 1.0 - cmatch_sum


def _cm_fused_pallas(cf_flat, vt_flat, vr_flat, vmem_limit):
    b, f, C, hw = cf_flat.shape
    F = f - 1
    return pl.pallas_call(
        _cm_fused_kernel,
        out_shape=jax.ShapeDtypeStruct((b, 2 * C + 1, hw), jnp.float32),
        grid_spec=pltpu.PrefetchScalarGridSpec(
            num_scalar_prefetch=0,
            grid=(b,),
            in_specs=[
                pl.BlockSpec((1, f, C, hw), lambda i: (i, 0, 0, 0)),
                pl.BlockSpec((1, 1, hw), lambda i: (i, 0, 0)),
                pl.BlockSpec((1, F, hw), lambda i: (i, 0, 0)),
            ],
            out_specs=pl.BlockSpec((1, 2 * C + 1, hw), lambda i: (i, 0, 0)),
        ),
        compiler_params=pltpu.CompilerParams(
            dimension_semantics=("parallel",),
            vmem_limit_bytes=int(vmem_limit),
        ),
    )(cf_flat, vt_flat, vr_flat)


# ---------------------------------------------------------------------------
# Fallback phase 1: masked cosine-similarity reduction over hw tiles.
# Per-lane partials accumulate in VMEM scratch; the lane reduction + the single
# lane-dense (F,128) store happen only at the last hw tile.
# ---------------------------------------------------------------------------
def _cm_gs_kernel(cf_ref, vt_ref, vr_ref, num_ref, den_ref, num_sc, den_sc):
    F = vr_ref.shape[1]

    @pl.when(pl.program_id(1) == 0)
    def _():
        num_sc[...] = jnp.zeros_like(num_sc)
        den_sc[...] = jnp.zeros_like(den_sc)

    feat0 = cf_ref[0, 0]                      # (C, T)
    vt = vt_ref[0]                            # (1, T)
    vr = vr_ref[0]                            # (F, T)
    vmap = vt * vr                            # (F, T)  hoisted mask product

    den_sc[...] += vmap
    for r in range(F):
        featr = cf_ref[0, r + 1]                                  # (C, T)
        s = jnp.sum(featr * feat0, axis=0, keepdims=True)         # (1, T)
        num_sc[r:r + 1, :] += s * vmap[r:r + 1, :]

    @pl.when(pl.program_id(1) == pl.num_programs(1) - 1)
    def _():
        num = jnp.sum(num_sc[...], axis=-1, keepdims=True)        # (F, 1)
        den = jnp.sum(den_sc[...], axis=-1, keepdims=True)        # (F, 1)
        num_ref[0, :, :] = jnp.broadcast_to(num, (F, 128))        # one lane-dense store
        den_ref[0, :, :] = jnp.broadcast_to(den, (F, 128))


def _cm_gs_pallas(cf_flat, vt_flat, vr_flat, hw_tile, vmem_limit):
    b, f, C, hw = cf_flat.shape
    F = f - 1
    n_tiles = hw // hw_tile
    out_shape = (
        jax.ShapeDtypeStruct((b, F, 128), jnp.float32),
        jax.ShapeDtypeStruct((b, F, 128), jnp.float32),
    )
    return pl.pallas_call(
        _cm_gs_kernel,
        out_shape=out_shape,
        grid_spec=pltpu.PrefetchScalarGridSpec(
            num_scalar_prefetch=0,
            grid=(b, n_tiles),
            in_specs=[
                pl.BlockSpec((1, f, C, hw_tile), lambda i, j: (i, 0, 0, j)),
                pl.BlockSpec((1, 1, hw_tile), lambda i, j: (i, 0, j)),
                pl.BlockSpec((1, F, hw_tile), lambda i, j: (i, 0, j)),
            ],
            out_specs=[
                pl.BlockSpec((1, F, 128), lambda i, j: (i, 0, 0)),
                pl.BlockSpec((1, F, 128), lambda i, j: (i, 0, 0)),
            ],
            scratch_shapes=[
                pltpu.VMEM((F, hw_tile), jnp.float32),
                pltpu.VMEM((F, hw_tile), jnp.float32),
            ],
        ),
        compiler_params=pltpu.CompilerParams(
            dimension_semantics=("parallel", "arbitrary"),
            vmem_limit_bytes=int(vmem_limit),
        ),
    )(cf_flat, vt_flat, vr_flat)


# ---------------------------------------------------------------------------
# Fallback phase 2: masked softmax over frames + weighted aggregation.
# Single output stream (c_mask row lives inside `out`); exp factorization.
# ---------------------------------------------------------------------------
def _cm_agg_kernel(gs_ref, cf_ref, vr_ref, out_ref):
    C = cf_ref.shape[2]
    F = vr_ref.shape[1]

    vr = vr_ref[0]                           # (F, T)
    gs = gs_ref[0, :, 0:1]                   # (F, 1) per-frame scalar scores

    mv = gs * vr                             # (F, T)
    m = jnp.max(mv, axis=0, keepdims=True)   # (1, T)
    e_neg_m = jnp.exp(-m)                    # (1, T)  one EUP pass instead of F
    e_gs = jnp.exp(gs)                       # (F, 1)  F tiny exps
    exps = (e_gs * e_neg_m) * vr             # (F, T)
    sums = jnp.sum(exps, axis=0, keepdims=True)
    sums = sums + (sums < 1e-4).astype(jnp.float32)
    c_match = exps / sums                    # (F, T)

    feat0 = cf_ref[0, 0]                     # (C, T)
    acc = cf_ref[0, 1] * c_match[0:1, :]
    for r in range(1, F):
        acc = acc + cf_ref[0, r + 1] * c_match[r:r + 1, :]

    out_ref[0, 0:C, :] = feat0
    out_ref[0, C:2 * C, :] = acc
    out_ref[0, 2 * C:2 * C + 1, :] = 1.0 - jnp.sum(c_match, axis=0, keepdims=True)


def _cm_agg_pallas(gs_b, cf_flat, vr_flat, hw_tile, vmem_limit):
    b, f, C, hw = cf_flat.shape
    F = f - 1
    n_tiles = hw // hw_tile
    return pl.pallas_call(
        _cm_agg_kernel,
        out_shape=jax.ShapeDtypeStruct((b, 2 * C + 1, hw), jnp.float32),
        grid_spec=pltpu.PrefetchScalarGridSpec(
            num_scalar_prefetch=0,
            grid=(b, n_tiles),
            in_specs=[
                pl.BlockSpec((1, F, 128), lambda i, j: (i, 0, 0)),
                pl.BlockSpec((1, f, C, hw_tile), lambda i, j: (i, 0, 0, j)),
                pl.BlockSpec((1, F, hw_tile), lambda i, j: (i, 0, j)),
            ],
            out_specs=pl.BlockSpec((1, 2 * C + 1, hw_tile), lambda i, j: (i, 0, j)),
        ),
        compiler_params=pltpu.CompilerParams(
            dimension_semantics=("parallel", "parallel"),
            vmem_limit_bytes=int(vmem_limit),
        ),
    )(gs_b, cf_flat, vr_flat)


# ---------------------------------------------------------------------------
# Full forward matching CM_Module.forward(c_feats, v_t, v_aligned).
#   c_feats  : (b, c_c, f, h, w)
#   v_t      : (b, 1, Hv, Wv)
#   v_aligned: (b, 1, f-1, Hv, Wv)
# returns (cat([c_feats[:,:,0], c_out, c_mask], 1), c_mask)
# ---------------------------------------------------------------------------
def cm_module_forward(c_feats, v_t, v_aligned, force_two_phase=False):
    b, c_c, f, h, w = c_feats.shape
    F = f - 1
    hw = h * w
    hw_p = ((hw + 127) // 128) * 128  # lane-dense padding (masks pad with 0 -> exact)

    v_t_resized = (_bilinear_resize_nchw(v_t, h, w) > 0.5).astype(jnp.float32)  # (b,1,h,w)
    vr_list = []
    for r in range(F):
        v_r = (_bilinear_resize_nchw(v_aligned[:, :, r], h, w) > 0.5).astype(jnp.float32)
        vr_list.append(v_r[:, 0])
    vr_maps = jnp.stack(vr_list, axis=1)                                        # (b,F,h,w)

    # Frame axis leading: kernel blocks end in (c_c, hw) -> (8,128)-friendly.
    cf_flat = jnp.transpose(c_feats.astype(jnp.float32),
                            (0, 2, 1, 3, 4)).reshape(b, f, c_c, hw)
    vt_flat = v_t_resized.reshape(b, 1, hw)
    vr_flat = vr_maps.reshape(b, F, hw)

    if hw_p != hw:
        pad = hw_p - hw
        cf_flat = jnp.pad(cf_flat, ((0, 0), (0, 0), (0, 0), (0, pad)))
        vt_flat = jnp.pad(vt_flat, ((0, 0), (0, 0), (0, pad)))
        vr_flat = jnp.pad(vr_flat, ((0, 0), (0, 0), (0, pad)))

    cap = _vmem_capacity_bytes()
    budget = int(0.70 * cap)
    fused_bytes = _fused_block_bytes(f, c_c, F, hw_p)
    use_fused = (not force_two_phase) and (fused_bytes <= budget)

    if use_fused:
        vmem_limit = min(int(0.85 * cap), fused_bytes + (16 << 20))
        out_flat = _cm_fused_pallas(cf_flat, vt_flat, vr_flat, vmem_limit)
    else:
        hw_tile, needed = _pick_hw_tile(hw_p, f, c_c, F, budget)
        vmem_limit = min(int(0.85 * cap), needed + (16 << 20))
        num_part, den_part = _cm_gs_pallas(cf_flat, vt_flat, vr_flat, hw_tile, vmem_limit)
        gs_num = num_part[:, :, 0]                               # (b, F)
        v_sum = den_part[:, :, 0]                                # (b, F)
        v_zero = v_sum < 1e-4
        v_sum = v_sum + v_zero.astype(jnp.float32)
        gs = jnp.where(v_zero, jnp.float32(0.0), gs_num / (v_sum * jnp.float32(c_c)))
        gs_b = jnp.broadcast_to(gs[:, :, None], (b, F, 128)).astype(jnp.float32)
        out_flat = _cm_agg_pallas(gs_b, cf_flat, vr_flat, hw_tile, vmem_limit)

    out_flat = out_flat[:, :, :hw]
    out = out_flat.reshape(b, 2 * c_c + 1, h, w)
    c_mask = out[:, 2 * c_c:2 * c_c + 1]
    return out, c_mask


# ---------------------------------------------------------------------------
# Pure-JAX reference (mirrors the PyTorch code) for a correctness check.
# ---------------------------------------------------------------------------
def cm_module_reference(c_feats, v_t, v_aligned):
    b, c_c, f, h, w = c_feats.shape
    F = f - 1
    v_t_resized = (_bilinear_resize_nchw(v_t, h, w) > 0.5).astype(jnp.float32)
    cos_sim, vr_map = [], []
    for r in range(F):
        v_r = (_bilinear_resize_nchw(v_aligned[:, :, r], h, w) > 0.5).astype(jnp.float32)
        vr_map.append(v_r)
        vmap = v_t_resized * v_r
        v_sum = vmap[:, 0].sum(-1).sum(-1)
        v_sum_zeros = v_sum < 1e-4
        v_sum = v_sum + v_sum_zeros.astype(jnp.float32)
        gs_norm = v_sum * c_c
        gs = (vmap * c_feats[:, :, 0] * c_feats[:, :, r + 1]).sum(-1).sum(-1).sum(-1) / gs_norm
        gs = jnp.where(v_sum_zeros, 0.0, gs)
        cos_sim.append(jnp.ones((b, c_c, h, w), jnp.float32) * gs.reshape(b, 1, 1, 1))
    cos_sim = jnp.stack(cos_sim, axis=2)
    vr_map = jnp.stack(vr_map, axis=2)
    masked_vec = cos_sim * vr_map
    max_vec = jnp.max(masked_vec, axis=2, keepdims=True)
    exps = jnp.exp(masked_vec - max_vec)
    masked_exps = exps * vr_map
    masked_sums = jnp.sum(masked_exps, axis=2, keepdims=True)
    masked_sums = masked_sums + (masked_sums < 1e-4).astype(jnp.float32)
    c_match = masked_exps / masked_sums
    c_out = jnp.sum(c_feats[:, :, 1:] * c_match, axis=2)
    c_mask = jnp.sum(c_match * vr_map, axis=2)
    c_mask = 1.0 - jnp.mean(c_mask, axis=1, keepdims=True)
    return jnp.concatenate([c_feats[:, :, 0], c_out, c_mask], axis=1), c_mask


if __name__ == "__main__":
    key = jax.random.PRNGKey(0)
    k1, k2, k3 = jax.random.split(key, 3)

    b, c_c, f, h, w = 2, 4, 5, 16, 16
    Hv, Wv = 8, 8

    c_feats = jax.random.normal(k1, (b, c_c, f, h, w), dtype=jnp.float32)
    v_t = jax.random.uniform(k2, (b, 1, Hv, Wv), dtype=jnp.float32)
    v_aligned = jax.random.uniform(k3, (b, 1, f - 1, Hv, Wv), dtype=jnp.float32)

    ref_out, ref_mask = cm_module_reference(c_feats, v_t, v_aligned)

    # 1) Fused single-pass kernel (primary path).
    out, c_mask = cm_module_forward(c_feats, v_t, v_aligned)
    out = jax.block_until_ready(out)
    c_mask = jax.block_until_ready(c_mask)
    assert out.shape == (b, 2 * c_c + 1, h, w), out.shape
    assert c_mask.shape == (b, 1, h, w), c_mask.shape
    assert jnp.allclose(out, ref_out, atol=5e-4, rtol=5e-4)
    assert jnp.allclose(c_mask, ref_mask, atol=5e-4, rtol=5e-4)

    # 2) Two-phase fallback (used when the per-batch slab would not fit VMEM).
    out2, c_mask2 = cm_module_forward(c_feats, v_t, v_aligned, force_two_phase=True)
    out2 = jax.block_until_ready(out2)
    assert jnp.allclose(out2, ref_out, atol=5e-4, rtol=5e-4)
    assert jnp.allclose(c_mask2, ref_mask, atol=5e-4, rtol=5e-4)

    # 3) Non-multiple-of-128 spatial size exercises the hw zero-padding path.
    h2 = w2 = 12
    c_feats_p = jax.random.normal(k1, (b, c_c, f, h2, w2), dtype=jnp.float32)
    ref_out_p, ref_mask_p = cm_module_reference(c_feats_p, v_t, v_aligned)
    out_p, c_mask_p = cm_module_forward(c_feats_p, v_t, v_aligned)
    out_p = jax.block_until_ready(out_p)
    assert jnp.allclose(out_p, ref_out_p, atol=5e-4, rtol=5e-4)
    assert jnp.allclose(c_mask_p, ref_mask_p, atol=5e-4, rtol=5e-4)

    print("KERNEL_OK")
</pallas_src>

<mosaic_0001>
module attributes {stable_mosaic.version = 11 : i64} {
  func.func @_cm_fused_kernel(%arg0: i32, %arg1: memref<1x5x4x256xf32, #tpu.memory_space<vmem>>, %arg2: memref<1x1x256xf32, #tpu.memory_space<vmem>>, %arg3: memref<1x4x256xf32, #tpu.memory_space<vmem>>, %arg4: memref<1x9x256xf32, #tpu.memory_space<vmem>>) attributes {dimension_semantics = [#tpu.dimension_semantics<parallel>], iteration_bounds = array<i64: 2>, scalar_prefetch = 0 : i64, scratch_operands = 0 : i64, tpu.core_type = #tpu.core_type<tc>, window_params = [{transform_indices = @transform_0, window_bounds = array<i64: 1, 5, 4, 256>}, {transform_indices = @transform_1, window_bounds = array<i64: 1, 1, 256>}, {transform_indices = @transform_2, window_bounds = array<i64: 1, 4, 256>}, {transform_indices = @transform_3, window_bounds = array<i64: 1, 9, 256>}]} {
    %c0 = arith.constant 0 : index
    %c0_0 = arith.constant 0 : index
    %c0_1 = arith.constant 0 : index
    %c0_2 = arith.constant 0 : index
    %0 = vector.load %arg1[%c0, %c0_0, %c0_1, %c0_2] : memref<1x5x4x256xf32, #tpu.memory_space<vmem>>, vector<1x1x4x256xf32>
    %1 = vector.shape_cast %0 : vector<1x1x4x256xf32> to vector<4x256xf32>
    %c0_3 = arith.constant 0 : index
    %c0_4 = arith.constant 0 : index
    %c0_5 = arith.constant 0 : index
    %2 = vector.load %arg2[%c0_3, %c0_4, %c0_5] : memref<1x1x256xf32, #tpu.memory_space<vmem>>, vector<1x1x256xf32>
    %3 = vector.shape_cast %2 : vector<1x1x256xf32> to vector<1x256xf32>
    %c0_6 = arith.constant 0 : index
    %c0_7 = arith.constant 0 : index
    %c0_8 = arith.constant 0 : index
    %4 = vector.load %arg3[%c0_6, %c0_7, %c0_8] : memref<1x4x256xf32, #tpu.memory_space<vmem>>, vector<1x4x256xf32>
    %5 = vector.shape_cast %4 : vector<1x4x256xf32> to vector<4x256xf32>
    %6 = vector.broadcast %3 : vector<1x256xf32> to vector<4x256xf32>
    %7 = arith.mulf %6, %5 : vector<4x256xf32>
    %c0_9 = arith.constant 0 : index
    %c1 = arith.constant 1 : index
    %c0_10 = arith.constant 0 : index
    %c0_11 = arith.constant 0 : index
    %8 = vector.load %arg1[%c0_9, %c1, %c0_10, %c0_11] : memref<1x5x4x256xf32, #tpu.memory_space<vmem>>, vector<1x1x4x256xf32>
    %9 = vector.shape_cast %8 : vector<1x1x4x256xf32> to vector<4x256xf32>
    %10 = arith.mulf %9, %1 : vector<4x256xf32>
    %cst = arith.constant dense<0.000000e+00> : vector<256xf32>
    %11 = vector.multi_reduction <add>, %10, %cst [0] : vector<4x256xf32> to vector<256xf32>
    %12 = vector.shape_cast %11 : vector<256xf32> to vector<1x256xf32>
    %13 = vector.extract_strided_slice %7 {offsets = [0, 0], sizes = [1, 256], strides = [1, 1]} : vector<4x256xf32> to vector<1x256xf32>
    %14 = arith.mulf %12, %13 : vector<1x256xf32>
    %cst_12 = arith.constant dense<0.000000e+00> : vector<1xf32>
    %15 = vector.multi_reduction <add>, %14, %cst_12 [1] : vector<1x256xf32> to vector<1xf32>
    %16 = vector.shape_cast %15 : vector<1xf32> to vector<1x1xf32>
    %17 = vector.extract_strided_slice %7 {offsets = [0, 0], sizes = [1, 256], strides = [1, 1]} : vector<4x256xf32> to vector<1x256xf32>
    %cst_13 = arith.constant dense<0.000000e+00> : vector<1xf32>
    %18 = vector.multi_reduction <add>, %17, %cst_13 [1] : vector<1x256xf32> to vector<1xf32>
    %19 = vector.shape_cast %18 : vector<1xf32> to vector<1x1xf32>
    %cst_14 = arith.constant 9.99999974E-5 : f32
    %20 = vector.broadcast %cst_14 : f32 to vector<1x1xf32>
    %21 = arith.cmpf olt, %19, %20 : vector<1x1xf32>
    %22 = arith.extui %21 : vector<1x1xi1> to vector<1x1xi32>
    %23 = arith.sitofp %22 : vector<1x1xi32> to vector<1x1xf32>
    %24 = arith.addf %19, %23 : vector<1x1xf32>
    %cst_15 = arith.constant 4.000000e+00 : f32
    %25 = vector.broadcast %cst_15 : f32 to vector<1x1xf32>
    %26 = arith.mulf %24, %25 : vector<1x1xf32>
    %27 = arith.divf %16, %26 : vector<1x1xf32>
    %cst_16 = arith.constant 0.000000e+00 : f32
    %28 = vector.broadcast %cst_16 : f32 to vector<1x1xf32>
    %29 = arith.select %21, %28, %27 : vector<1x1xi1>, vector<1x1xf32>
    %c0_17 = arith.constant 0 : index
    %c2 = arith.constant 2 : index
    %c0_18 = arith.constant 0 : index
    %c0_19 = arith.constant 0 : index
    %30 = vector.load %arg1[%c0_17, %c2, %c0_18, %c0_19] : memref<1x5x4x256xf32, #tpu.memory_space<vmem>>, vector<1x1x4x256xf32>
    %31 = vector.shape_cast %30 : vector<1x1x4x256xf32> to vector<4x256xf32>
    %32 = arith.mulf %31, %1 : vector<4x256xf32>
    %cst_20 = arith.constant dense<0.000000e+00> : vector<256xf32>
    %33 = vector.multi_reduction <add>, %32, %cst_20 [0] : vector<4x256xf32> to vector<256xf32>
    %34 = vector.shape_cast %33 : vector<256xf32> to vector<1x256xf32>
    %35 = vector.extract_strided_slice %7 {offsets = [1, 0], sizes = [1, 256], strides = [1, 1]} : vector<4x256xf32> to vector<1x256xf32>
    %36 = arith.mulf %34, %35 : vector<1x256xf32>
    %cst_21 = arith.constant dense<0.000000e+00> : vector<1xf32>
    %37 = vector.multi_reduction <add>, %36, %cst_21 [1] : vector<1x256xf32> to vector<1xf32>
    %38 = vector.shape_cast %37 : vector<1xf32> to vector<1x1xf32>
    %39 = vector.extract_strided_slice %7 {offsets = [1, 0], sizes = [1, 256], strides = [1, 1]} : vector<4x256xf32> to vector<1x256xf32>
    %cst_22 = arith.constant dense<0.000000e+00> : vector<1xf32>
    %40 = vector.multi_reduction <add>, %39, %cst_22 [1] : vector<1x256xf32> to vector<1xf32>
    %41 = vector.shape_cast %40 : vector<1xf32> to vector<1x1xf32>
    %cst_23 = arith.constant 9.99999974E-5 : f32
    %42 = vector.broadcast %cst_23 : f32 to vector<1x1xf32>
    %43 = arith.cmpf olt, %41, %42 : vector<1x1xf32>
    %44 = arith.extui %43 : vector<1x1xi1> to vector<1x1xi32>
    %45 = arith.sitofp %44 : vector<1x1xi32> to vector<1x1xf32>
    %46 = arith.addf %41, %45 : vector<1x1xf32>
    %cst_24 = arith.constant 4.000000e+00 : f32
    %47 = vector.broadcast %cst_24 : f32 to vector<1x1xf32>
    %48 = arith.mulf %46, %47 : vector<1x1xf32>
    %49 = arith.divf %38, %48 : vector<1x1xf32>
    %cst_25 = arith.constant 0.000000e+00 : f32
    %50 = vector.broadcast %cst_25 : f32 to vector<1x1xf32>
    %51 = arith.select %43, %50, %49 : vector<1x1xi1>, vector<1x1xf32>
    %c0_26 = arith.constant 0 : index
    %c3 = arith.constant 3 : index
    %c0_27 = arith.constant 0 : index
    %c0_28 = arith.constant 0 : index
    %52 = vector.load %arg1[%c0_26, %c3, %c0_27, %c0_28] : memref<1x5x4x256xf32, #tpu.memory_space<vmem>>, vector<1x1x4x256xf32>
    %53 = vector.shape_cast %52 : vector<1x1x4x256xf32> to vector<4x256xf32>
    %54 = arith.mulf %53, %1 : vector<4x256xf32>
    %cst_29 = arith.constant dense<0.000000e+00> : vector<256xf32>
    %55 = vector.multi_reduction <add>, %54, %cst_29 [0] : vector<4x256xf32> to vector<256xf32>
    %56 = vector.shape_cast %55 : vector<256xf32> to vector<1x256xf32>
    %57 = vector.extract_strided_slice %7 {offsets = [2, 0], sizes = [1, 256], strides = [1, 1]} : vector<4x256xf32> to vector<1x256xf32>
    %58 = arith.mulf %56, %57 : vector<1x256xf32>
    %cst_30 = arith.constant dense<0.000000e+00> : vector<1xf32>
    %59 = vector.multi_reduction <add>, %58, %cst_30 [1] : vector<1x256xf32> to vector<1xf32>
    %60 = vector.shape_cast %59 : vector<1xf32> to vector<1x1xf32>
    %61 = vector.extract_strided_slice %7 {offsets = [2, 0], sizes = [1, 256], strides = [1, 1]} : vector<4x256xf32> to vector<1x256xf32>
    %cst_31 = arith.constant dense<0.000000e+00> : vector<1xf32>
    %62 = vector.multi_reduction <add>, %61, %cst_31 [1] : vector<1x256xf32> to vector<1xf32>
    %63 = vector.shape_cast %62 : vector<1xf32> to vector<1x1xf32>
    %cst_32 = arith.constant 9.99999974E-5 : f32
    %64 = vector.broadcast %cst_32 : f32 to vector<1x1xf32>
    %65 = arith.cmpf olt, %63, %64 : vector<1x1xf32>
    %66 = arith.extui %65 : vector<1x1xi1> to vector<1x1xi32>
    %67 = arith.sitofp %66 : vector<1x1xi32> to vector<1x1xf32>
    %68 = arith.addf %63, %67 : vector<1x1xf32>
    %cst_33 = arith.constant 4.000000e+00 : f32
    %69 = vector.broadcast %cst_33 : f32 to vector<1x1xf32>
    %70 = arith.mulf %68, %69 : vector<1x1xf32>
    %71 = arith.divf %60, %70 : vector<1x1xf32>
    %cst_34 = arith.constant 0.000000e+00 : f32
    %72 = vector.broadcast %cst_34 : f32 to vector<1x1xf32>
    %73 = arith.select %65, %72, %71 : vector<1x1xi1>, vector<1x1xf32>
    %c0_35 = arith.constant 0 : index
    %c4 = arith.constant 4 : index
    %c0_36 = arith.constant 0 : index
    %c0_37 = arith.constant 0 : index
    %74 = vector.load %arg1[%c0_35, %c4, %c0_36, %c0_37] : memref<1x5x4x256xf32, #tpu.memory_space<vmem>>, vector<1x1x4x256xf32>
    %75 = vector.shape_cast %74 : vector<1x1x4x256xf32> to vector<4x256xf32>
    %76 = arith.mulf %75, %1 : vector<4x256xf32>
    %cst_38 = arith.constant dense<0.000000e+00> : vector<256xf32>
    %77 = vector.multi_reduction <add>, %76, %cst_38 [0] : vector<4x256xf32> to vector<256xf32>
    %78 = vector.shape_cast %77 : vector<256xf32> to vector<1x256xf32>
    %79 = vector.extract_strided_slice %7 {offsets = [3, 0], sizes = [1, 256], strides = [1, 1]} : vector<4x256xf32> to vector<1x256xf32>
    %80 = arith.mulf %78, %79 : vector<1x256xf32>
    %cst_39 = arith.constant dense<0.000000e+00> : vector<1xf32>
    %81 = vector.multi_reduction <add>, %80, %cst_39 [1] : vector<1x256xf32> to vector<1xf32>
    %82 = vector.shape_cast %81 : vector<1xf32> to vector<1x1xf32>
    %83 = vector.extract_strided_slice %7 {offsets = [3, 0], sizes = [1, 256], strides = [1, 1]} : vector<4x256xf32> to vector<1x256xf32>
    %cst_40 = arith.constant dense<0.000000e+00> : vector<1xf32>
    %84 = vector.multi_reduction <add>, %83, %cst_40 [1] : vector<1x256xf32> to vector<1xf32>
    %85 = vector.shape_cast %84 : vector<1xf32> to vector<1x1xf32>
    %cst_41 = arith.constant 9.99999974E-5 : f32
    %86 = vector.broadcast %cst_41 : f32 to vector<1x1xf32>
    %87 = arith.cmpf olt, %85, %86 : vector<1x1xf32>
    %88 = arith.extui %87 : vector<1x1xi1> to vector<1x1xi32>
    %89 = arith.sitofp %88 : vector<1x1xi32> to vector<1x1xf32>
    %90 = arith.addf %85, %89 : vector<1x1xf32>
    %cst_42 = arith.constant 4.000000e+00 : f32
    %91 = vector.broadcast %cst_42 : f32 to vector<1x1xf32>
    %92 = arith.mulf %90, %91 : vector<1x1xf32>
    %93 = arith.divf %82, %92 : vector<1x1xf32>
    %cst_43 = arith.constant 0.000000e+00 : f32
    %94 = vector.broadcast %cst_43 : f32 to vector<1x1xf32>
    %95 = arith.select %87, %94, %93 : vector<1x1xi1>, vector<1x1xf32>
    %96 = vector.extract_strided_slice %5 {offsets = [0, 0], sizes = [1, 256], strides = [1, 1]} : vector<4x256xf32> to vector<1x256xf32>
    %97 = vector.broadcast %29 : vector<1x1xf32> to vector<1x256xf32>
    %98 = arith.mulf %97, %96 : vector<1x256xf32>
    %99 = vector.extract_strided_slice %5 {offsets = [1, 0], sizes = [1, 256], strides = [1, 1]} : vector<4x256xf32> to vector<1x256xf32>
    %100 = vector.broadcast %51 : vector<1x1xf32> to vector<1x256xf32>
    %101 = arith.mulf %100, %99 : vector<1x256xf32>
    %102 = arith.maximumf %98, %101 : vector<1x256xf32>
    %103 = vector.extract_strided_slice %5 {offsets = [2, 0], sizes = [1, 256], strides = [1, 1]} : vector<4x256xf32> to vector<1x256xf32>
    %104 = vector.broadcast %73 : vector<1x1xf32> to vector<1x256xf32>
    %105 = arith.mulf %104, %103 : vector<1x256xf32>
    %106 = arith.maximumf %102, %105 : vector<1x256xf32>
    %107 = vector.extract_strided_slice %5 {offsets = [3, 0], sizes = [1, 256], strides = [1, 1]} : vector<4x256xf32> to vector<1x256xf32>
    %108 = vector.broadcast %95 : vector<1x1xf32> to vector<1x256xf32>
    %109 = arith.mulf %108, %107 : vector<1x256xf32>
    %110 = arith.maximumf %106, %109 : vector<1x256xf32>
    %cst_44 = arith.constant 0.000000e+00 : f32
    %111 = vector.broadcast %cst_44 : f32 to vector<1x256xf32>
    %112 = arith.subf %111, %110 : vector<1x256xf32>
    %113 = math.exp %112 : vector<1x256xf32>
    %114 = math.exp %29 : vector<1x1xf32>
    %115 = vector.broadcast %114 : vector<1x1xf32> to vector<1x256xf32>
    %116 = arith.mulf %115, %113 : vector<1x256xf32>
    %117 = vector.extract_strided_slice %5 {offsets = [0, 0], sizes = [1, 256], strides = [1, 1]} : vector<4x256xf32> to vector<1x256xf32>
    %118 = arith.mulf %116, %117 : vector<1x256xf32>
    %119 = math.exp %51 : vector<1x1xf32>
    %120 = vector.broadcast %119 : vector<1x1xf32> to vector<1x256xf32>
    %121 = arith.mulf %120, %113 : vector<1x256xf32>
    %122 = vector.extract_strided_slice %5 {offsets = [1, 0], sizes = [1, 256], strides = [1, 1]} : vector<4x256xf32> to vector<1x256xf32>
    %123 = arith.mulf %121, %122 : vector<1x256xf32>
    %124 = arith.addf %118, %123 : vector<1x256xf32>
    %125 = math.exp %73 : vector<1x1xf32>
    %126 = vector.broadcast %125 : vector<1x1xf32> to vector<1x256xf32>
    %127 = arith.mulf %126, %113 : vector<1x256xf32>
    %128 = vector.extract_strided_slice %5 {offsets = [2, 0], sizes = [1, 256], strides = [1, 1]} : vector<4x256xf32> to vector<1x256xf32>
    %129 = arith.mulf %127, %128 : vector<1x256xf32>
    %130 = arith.addf %124, %129 : vector<1x256xf32>
    %131 = math.exp %95 : vector<1x1xf32>
    %132 = vector.broadcast %131 : vector<1x1xf32> to vector<1x256xf32>
    %133 = arith.mulf %132, %113 : vector<1x256xf32>
    %134 = vector.extract_strided_slice %5 {offsets = [3, 0], sizes = [1, 256], strides = [1, 1]} : vector<4x256xf32> to vector<1x256xf32>
    %135 = arith.mulf %133, %134 : vector<1x256xf32>
    %136 = arith.addf %130, %135 : vector<1x256xf32>
    %cst_45 = arith.constant 9.99999974E-5 : f32
    %137 = vector.broadcast %cst_45 : f32 to vector<1x256xf32>
    %138 = arith.cmpf olt, %136, %137 : vector<1x256xf32>
    %139 = arith.extui %138 : vector<1x256xi1> to vector<1x256xi32>
    %140 = arith.sitofp %139 : vector<1x256xi32> to vector<1x256xf32>
    %141 = arith.addf %136, %140 : vector<1x256xf32>
    %cst_46 = arith.constant 1.000000e+00 : f32
    %142 = vector.broadcast %cst_46 : f32 to vector<1x256xf32>
    %143 = arith.divf %142, %141 : vector<1x256xf32>
    %144 = arith.mulf %118, %143 : vector<1x256xf32>
    %c0_47 = arith.constant 0 : index
    %c1_48 = arith.constant 1 : index
    %c0_49 = arith.constant 0 : index
    %c0_50 = arith.constant 0 : index
    %145 = vector.load %arg1[%c0_47, %c1_48, %c0_49, %c0_50] : memref<1x5x4x256xf32, #tpu.memory_space<vmem>>, vector<1x1x4x256xf32>
    %146 = vector.shape_cast %145 : vector<1x1x4x256xf32> to vector<4x256xf32>
    %147 = vector.broadcast %144 : vector<1x256xf32> to vector<4x256xf32>
    %148 = arith.mulf %146, %147 : vector<4x256xf32>
    %149 = arith.mulf %123, %143 : vector<1x256xf32>
    %c0_51 = arith.constant 0 : index
    %c2_52 = arith.constant 2 : index
    %c0_53 = arith.constant 0 : index
    %c0_54 = arith.constant 0 : index
    %150 = vector.load %arg1[%c0_51, %c2_52, %c0_53, %c0_54] : memref<1x5x4x256xf32, #tpu.memory_space<vmem>>, vector<1x1x4x256xf32>
    %151 = vector.shape_cast %150 : vector<1x1x4x256xf32> to vector<4x256xf32>
    %152 = vector.broadcast %149 : vector<1x256xf32> to vector<4x256xf32>
    %153 = arith.mulf %151, %152 : vector<4x256xf32>
    %154 = arith.addf %148, %153 : vector<4x256xf32>
    %155 = arith.addf %144, %149 : vector<1x256xf32>
    %156 = arith.mulf %129, %143 : vector<1x256xf32>
    %c0_55 = arith.constant 0 : index
    %c3_56 = arith.constant 3 : index
    %c0_57 = arith.constant 0 : index
    %c0_58 = arith.constant 0 : index
    %157 = vector.load %arg1[%c0_55, %c3_56, %c0_57, %c0_58] : memref<1x5x4x256xf32, #tpu.memory_space<vmem>>, vector<1x1x4x256xf32>
    %158 = vector.shape_cast %157 : vector<1x1x4x256xf32> to vector<4x256xf32>
    %159 = vector.broadcast %156 : vector<1x256xf32> to vector<4x256xf32>
    %160 = arith.mulf %158, %159 : vector<4x256xf32>
    %161 = arith.addf %154, %160 : vector<4x256xf32>
    %162 = arith.addf %155, %156 : vector<1x256xf32>
    %163 = arith.mulf %135, %143 : vector<1x256xf32>
    %c0_59 = arith.constant 0 : index
    %c4_60 = arith.constant 4 : index
    %c0_61 = arith.constant 0 : index
    %c0_62 = arith.constant 0 : index
    %164 = vector.load %arg1[%c0_59, %c4_60, %c0_61, %c0_62] : memref<1x5x4x256xf32, #tpu.memory_space<vmem>>, vector<1x1x4x256xf32>
    %165 = vector.shape_cast %164 : vector<1x1x4x256xf32> to vector<4x256xf32>
    %166 = vector.broadcast %163 : vector<1x256xf32> to vector<4x256xf32>
    %167 = arith.mulf %165, %166 : vector<4x256xf32>
    %168 = arith.addf %161, %167 : vector<4x256xf32>
    %169 = arith.addf %162, %163 : vector<1x256xf32>
    %c0_63 = arith.constant 0 : index
    %c0_64 = arith.constant 0 : index
    %c0_65 = arith.constant 0 : index
    %170 = vector.load %arg4[%c0_63, %c0_64, %c0_65] : memref<1x9x256xf32, #tpu.memory_space<vmem>>, vector<1x4x256xf32>
    %171 = vector.shape_cast %170 : vector<1x4x256xf32> to vector<4x256xf32>
    %172 = vector.shape_cast %1 : vector<4x256xf32> to vector<1x4x256xf32>
    tpu.vector_store %arg4[%c0_63, %c0_64, %c0_65], %172 {strides = array<i32>} : memref<1x9x256xf32, #tpu.memory_space<vmem>>, vector<1x4x256xf32>,
    %c0_66 = arith.constant 0 : index
    %c4_67 = arith.constant 4 : index
    %c0_68 = arith.constant 0 : index
    %173 = vector.load %arg4[%c0_66, %c4_67, %c0_68] : memref<1x9x256xf32, #tpu.memory_space<vmem>>, vector<1x4x256xf32>
    %174 = vector.shape_cast %173 : vector<1x4x256xf32> to vector<4x256xf32>
    %175 = vector.shape_cast %168 : vector<4x256xf32> to vector<1x4x256xf32>
    tpu.vector_store %arg4[%c0_66, %c4_67, %c0_68], %175 {strides = array<i32>} : memref<1x9x256xf32, #tpu.memory_space<vmem>>, vector<1x4x256xf32>,
    %cst_69 = arith.constant 1.000000e+00 : f32
    %176 = vector.broadcast %cst_69 : f32 to vector<1x256xf32>
    %177 = arith.subf %176, %169 : vector<1x256xf32>
    %c0_70 = arith.constant 0 : index
    %c8 = arith.constant 8 : index
    %c0_71 = arith.constant 0 : index
    %178 = vector.load %arg4[%c0_70, %c8, %c0_71] : memref<1x9x256xf32, #tpu.memory_space<vmem>>, vector<1x1x256xf32>
    %179 = vector.shape_cast %178 : vector<1x1x256xf32> to vector<1x256xf32>
    %180 = vector.shape_cast %177 : vector<1x256xf32> to vector<1x1x256xf32>
    tpu.vector_store %arg4[%c0_70, %c8, %c0_71], %180 {strides = array<i32>} : memref<1x9x256xf32, #tpu.memory_space<vmem>>, vector<1x1x256xf32>,
    return
  }
  func.func @transform_0(%arg0: i32) -> (i32, i32, i32, i32) {
    %c0_i32 = arith.constant 0 : i32
    %c0_i32_0 = arith.constant 0 : i32
    %c0_i32_1 = arith.constant 0 : i32
    %c0_i32_2 = arith.constant 0 : i32
    return %arg0, %c0_i32, %c0_i32_0, %c0_i32_1 : i32, i32, i32, i32
  }
  func.func @transform_1(%arg0: i32) -> (i32, i32, i32) {
    %c0_i32 = arith.constant 0 : i32
    %c0_i32_0 = arith.constant 0 : i32
    %c0_i32_1 = arith.constant 0 : i32
    return %arg0, %c0_i32, %c0_i32_0 : i32, i32, i32
  }
  func.func @transform_2(%arg0: i32) -> (i32, i32, i32) {
    %c0_i32 = arith.constant 0 : i32
    %c0_i32_0 = arith.constant 0 : i32
    %c0_i32_1 = arith.constant 0 : i32
    return %arg0, %c0_i32, %c0_i32_0 : i32, i32, i32
  }
  func.func @transform_3(%arg0: i32) -> (i32, i32, i32) {
    %c0_i32 = arith.constant 0 : i32
    %c0_i32_0 = arith.constant 0 : i32
    %c0_i32_1 = arith.constant 0 : i32
    return %arg0, %c0_i32, %c0_i32_0 : i32, i32, i32
  }
}

</mosaic_0001>

<llo_original>
// kernel: tpu_custom_call.1
$region0: #{tpu_custom_call.1}
  #allocation0 [shape = 'u32[]', space=smem, size = 0x4, offset = 0x4, fixed_abs, tag = 'smem constant byte address 0x4 - core index']
  #allocation1 [shape = 'u32[144,128]{1,0:T(1,128)}', space=vmem, size = 0x12000, scoped, tag = 'internal scratch']
  %s0 = inlined_call_operand.hbm [shape: f32[2,5,4,256], index: 0, kind: input, shape index: {}]
  %s1 = inlined_call_operand.hbm [shape: f32[2,1,256], index: 1, kind: input, shape index: {}]
  %s2 = inlined_call_operand.hbm [shape: f32[2,4,256], index: 2, kind: input, shape index: {}]
  %s3 = inlined_call_operand.vmem [shape: f32[2,9,256], index: 3, kind: output, shape index: {}]
  %s4 = sld [smem:[#allocation0]]
  $region57: #{tpu_custom_call.1} parent=0
    _
  %s6 = ssub.s32 1, %s4
  %s7 = scalar_select 0, %s6, %s4
  $region1: #{tpu_custom_call.1} parent=0
    #allocation2 [shape = 'u8[40960]{0}', space=vmem, size = 0xa000, scoped, tag = 'input window, operand 0']
    #allocation3 [shape = 's32[2]{0}', space=sflag, size = 0x8, scoped, tag = 'scoped memory for tpu_custom_call.1']
    #allocation4 [shape = 'u8[2048]{0}', space=vmem, size = 0x800, scoped, tag = 'input window, operand 1']
    #allocation5 [shape = 's32[2]{0}', space=sflag, size = 0x8, scoped, tag = 'scoped memory for tpu_custom_call.1']
    #allocation6 [shape = 'u8[8192]{0}', space=vmem, size = 0x2000, scoped, tag = 'input window, operand 2']
    %8 = vsyncpa [#allocation3], 0
    %s9 = scalar_lea.sflag [#allocation3], 1
    %10 = vsyncpa %s9, 0
    %11 = vsyncpa [#allocation5], 0
    %s12 = scalar_lea.sflag [#allocation5], 1
    %13 = vsyncpa %s12, 0
    loop: start=0, step=1, limit=4
    $region2: #{tpu_custom_call.1} parent=1 // loop_pre_header
      _
    $region3: #{tpu_custom_call.1} parent=1 // loop_header
      %s15 = sphi 0, %s19
      %p16 = scmp.ge.s32.totalorder %s15, 4
      %s25 = sphi 0, %s27
      %s28 = sphi 0, %s25
      %s29 = sphi 0, %s28
      %s45 = sphi 0, %s29
      %s51 = sphi 0, %s53
      %s54 = sphi 0, %s51
      %s55 = sphi 0, %s54
      %s71 = sphi 0, %s55
      %s77 = sphi 0, %s79
      %s80 = sphi 0, %s77
      %s81 = sphi 0, %s80
      %s97 = sphi 0, %s81
      %s103 = sphi 0, %s105
      %s106 = sphi 0, %s103
      %s107 = sphi 0, %s106
      %s123 = sphi 0, %s107
    $region4: #{tpu_custom_call.1} parent=1 // loop_header_branch
      %18 = sbr.rel (%p16) target = $region8
    $region5: #{tpu_custom_call.1} parent=1 // loop_body
      %s20 = ssub.s32 %s15, 1
      %s21 = ssub.s32 %s15, 2
      %s22 = sadd.s32 %s15, 1
      %s23 = ssub.s32 %s15, %s22
      %p24 = scmp.eq.s32.totalorder %s23, 0
      %s26 = sadd.s32 %s25, 1
      %s27 = scalar_select %p24, %s25, %s26
      %p30 = pneg %p24
      %p31 = scmp.eq.s32.totalorder %s15, 1
      %p32 = por %p30, %p31
      %p33 = scmp.ne.s32.totalorder %s25, %s28
      %p34 = scmp.eq.s32.totalorder %s15, 0
      %p35 = por %p33, %p34
      %p36 = scmp.ne.s32.totalorder %s25, %s28
      %p37 = scmp.eq.s32.totalorder %s20, 1
      %p38 = por %p36, %p37
      %p39 = scmp.ne.s32.totalorder %s28, %s29
      %p40 = scmp.eq.s32.totalorder %s20, 0
      %p41 = por %p39, %p40
      %p42 = scmp.ne.s32.totalorder %s28, %s29
      %p43 = scmp.eq.s32.totalorder %s21, 1
      %p44 = por %p42, %p43
      %p46 = scmp.ne.s32.totalorder %s29, %s45
      %p47 = scmp.eq.s32.totalorder %s21, 0
      %p48 = por %p46, %p47
      %s49 = ssub.s32 %s15, %s22
      %p50 = scmp.eq.s32.totalorder %s49, 0
      %s52 = sadd.s32 %s51, 1
      %s53 = scalar_select %p50, %s51, %s52
      %p56 = pneg %p50
      %p57 = scmp.eq.s32.totalorder %s15, 1
      %p58 = por %p56, %p57
      %p59 = scmp.ne.s32.totalorder %s51, %s54
      %p60 = scmp.eq.s32.totalorder %s15, 0
      %p61 = por %p59, %p60
      %p62 = scmp.ne.s32.totalorder %s51, %s54
      %p63 = scmp.eq.s32.totalorder %s20, 1
      %p64 = por %p62, %p63
      %p65 = scmp.ne.s32.totalorder %s54, %s55
      %p66 = scmp.eq.s32.totalorder %s20, 0
      %p67 = por %p65, %p66
      %p68 = scmp.ne.s32.totalorder %s54, %s55
      %p69 = scmp.eq.s32.totalorder %s21, 1
      %p70 = por %p68, %p69
      %p72 = scmp.ne.s32.totalorder %s55, %s71
      %p73 = scmp.eq.s32.totalorder %s21, 0
      %p74 = por %p72, %p73
      %s75 = ssub.s32 %s15, %s22
      %p76 = scmp.eq.s32.totalorder %s75, 0
      %s78 = sadd.s32 %s77, 1
      %s79 = scalar_select %p76, %s77, %s78
      %p82 = pneg %p76
      %p83 = scmp.eq.s32.totalorder %s15, 1
      %p84 = por %p82, %p83
      %p85 = scmp.ne.s32.totalorder %s77, %s80
      %p86 = scmp.eq.s32.totalorder %s15, 0
      %p87 = por %p85, %p86
      %p88 = scmp.ne.s32.totalorder %s77, %s80
      %p89 = scmp.eq.s32.totalorder %s20, 1
      %p90 = por %p88, %p89
      %p91 = scmp.ne.s32.totalorder %s80, %s81
      %p92 = scmp.eq.s32.totalorder %s20, 0
      %p93 = por %p91, %p92
      %p94 = scmp.ne.s32.totalorder %s80, %s81
      %p95 = scmp.eq.s32.totalorder %s21, 1
      %p96 = por %p94, %p95
      %p98 = scmp.ne.s32.totalorder %s81, %s97
      %p99 = scmp.eq.s32.totalorder %s21, 0
      %p100 = por %p98, %p99
      %s101 = ssub.s32 %s15, %s22
      %p102 = scmp.eq.s32.totalorder %s101, 0
      %s104 = sadd.s32 %s103, 1
      %s105 = scalar_select %p102, %s103, %s104
      %p108 = pneg %p102
      %p109 = scmp.eq.s32.totalorder %s15, 1
      %p110 = por %p108, %p109
      %p111 = scmp.ne.s32.totalorder %s103, %s106
      %p112 = scmp.eq.s32.totalorder %s15, 0
      %p113 = por %p111, %p112
      %p114 = scmp.ne.s32.totalorder %s103, %s106
      %p115 = scmp.eq.s32.totalorder %s20, 1
      %p116 = por %p114, %p115
      %p117 = scmp.ne.s32.totalorder %s106, %s107
      %p118 = scmp.eq.s32.totalorder %s20, 0
      %p119 = por %p117, %p118
      %p120 = scmp.ne.s32.totalorder %s106, %s107
      %p121 = scmp.eq.s32.totalorder %s21, 1
      %p122 = por %p120, %p121
      %p124 = scmp.ne.s32.totalorder %s107, %s123
      %p125 = scmp.eq.s32.totalorder %s21, 0
      %p126 = por %p124, %p125
      %p127 = scmp.le.s32.totalorder 1, %s15
      %p128 = scmp.lt.s32.totalorder %s15, 3
      %p129 = pnand %p127, %p128
      %p130 = pneg %p129
      // Predicated region
      $region9: #{tpu_custom_call.1} parent=5 // pred_check
        _
      $region10: #{tpu_custom_call.1} parent=5 // pred_check_branch
        %132 = sbr.rel (%p129) target = $region12
      $region11: #{tpu_custom_call.1} parent=5 // pred_region
        %s133 = ssub.s32 %s15, 1
      $region12: #{tpu_custom_call.1} parent=5 // pred_fallthru
        _
      %p134 = scmp.lt.s32.totalorder %s15, 2
      // Predicated region
      $region13: #{tpu_custom_call.1} parent=5 // pred_check
        %p135 = pneg %p134
      $region14: #{tpu_custom_call.1} parent=5 // pred_check_branch
        %137 = sbr.rel (%p135) target = $region16
      $region15: #{tpu_custom_call.1} parent=5 // pred_region
        // Predicated region
        $region17: #{tpu_custom_call.1} parent=15 // pred_check
          %p138 = pneg %p35
        $region18: #{tpu_custom_call.1} parent=15 // pred_check_branch
          %140 = sbr.rel (%p138) target = $region20
        $region19: #{tpu_custom_call.1} parent=15 // pred_region
          %s141 = sand.u32 %s25, 1
          %s142 = scalar_lea.sflag [#allocation3], %s141
          %s143 = sand.u32 %s25, 1
          %s144 = smul.addr %s143, 40
          %s145 = scalar_lea.vmem [#allocation2], %s144
          %s147 = ssub.s32 640, 640
          %148 = vsyncadd %s142, %s147
          %s149 = smul.addr %s15, 10
          %s150 = smul.addr %s149, 64
          %s151 = scalar_lea.hbm %s0, %s150
          %s152 = sshll.u32 %s145, 4
          %s153 = int_to_ptr.vmem [resolvable:$true] %s152
          %158 = dma.hbm_to_vmem [thread:$0]  %s151, 640, %s153, %s142, 128, 128, 8
        $region20: #{tpu_custom_call.1} parent=15 // pred_fallthru
          _
        // Predicated region
        $region21: #{tpu_custom_call.1} parent=15 // pred_check
          %p159 = pneg %p61
        $region22: #{tpu_custom_call.1} parent=15 // pred_check_branch
          %161 = sbr.rel (%p159) target = $region24
        $region23: #{tpu_custom_call.1} parent=15 // pred_region
          %s162 = sand.u32 %s15, 1
          %s163 = scalar_lea.sflag [#allocation5], %s162
          %s164 = sand.u32 %s51, 1
          %s165 = smul.addr %s164, 2
          %s166 = scalar_lea.vmem [#allocation4], %s165
          %s168 = ssub.s32 32, 32
          %169 = vsyncadd %s163, %s168
          %s170 = smul.addr %s15, 2
          %s171 = smul.addr %s170, 16
          %s172 = scalar_lea.hbm %s1, %s171
          %s174 = sshll.u32 %s166, 4
          %s175 = int_to_ptr.vmem [resolvable:$true] %s174
          %177 = dma.hbm_to_vmem [thread:$0]  %s172, 32, %s175, %s163
        $region24: #{tpu_custom_call.1} parent=15 // pred_fallthru
          _
        // Predicated region
        $region25: #{tpu_custom_call.1} parent=15 // pred_check
          %p178 = pneg %p87
        $region26: #{tpu_custom_call.1} parent=15 // pred_check_branch
          %180 = sbr.rel (%p178) target = $region28
        $region27: #{tpu_custom_call.1} parent=15 // pred_region
          %s181 = sand.u32 %s15, 1
          %s182 = scalar_lea.sflag [#allocation5], %s181
          %s183 = sand.u32 %s77, 1
          %s184 = smul.addr %s183, 8
          %s185 = scalar_lea.vmem [#allocation6], %s184
          %s187 = ssub.s32 128, 128
          %188 = vsyncadd %s182, %s187
          %s189 = smul.addr %s15, 2
          %s190 = smul.addr %s189, 64
          %s191 = scalar_lea.hbm %s2, %s190
          %s193 = sshll.u32 %s185, 4
          %s194 = int_to_ptr.vmem [resolvable:$true] %s193
          %196 = dma.hbm_to_vmem [thread:$0]  %s191, 128, %s194, %s182
        $region28: #{tpu_custom_call.1} parent=15 // pred_fallthru
          _
      $region16: #{tpu_custom_call.1} parent=5 // pred_fallthru
        _
      %p197 = scmp.le.s32.totalorder 1, %s15
      %p198 = scmp.lt.s32.totalorder %s15, 3
      %p199 = pnand %p197, %p198
      %p200 = pneg %p199
      // Predicated region
      $region29: #{tpu_custom_call.1} parent=5 // pred_check
        _
      $region30: #{tpu_custom_call.1} parent=5 // pred_check_branch
        %202 = sbr.rel (%p199) target = $region32
      $region31: #{tpu_custom_call.1} parent=5 // pred_region
        %s203 = ssub.s32 %s15, 1
        %s204 = sand.u32 %s28, 1
        %s205 = scalar_lea.sflag [#allocation3], %s204
        %s206 = sand.u32 %s28, 1
        %s207 = smul.addr %s206, 40
        %s208 = scalar_lea.vmem [#allocation2], %s207
        // Predicated region
        $region33: #{tpu_custom_call.1} parent=31 // pred_check
          %p209 = pneg %p41
        $region34: #{tpu_custom_call.1} parent=31 // pred_check_branch
          %211 = sbr.rel (%p209) target = $region36
        $region35: #{tpu_custom_call.1} parent=31 // pred_region
          %212 = dma.done %s205, 640
        $region36: #{tpu_custom_call.1} parent=31 // pred_fallthru
          _
        %s213 = sand.u32 %s20, 1
        %s214 = scalar_lea.sflag [#allocation5], %s213
        %s215 = sand.u32 %s54, 1
        %s216 = smul.addr %s215, 2
        %s217 = scalar_lea.vmem [#allocation4], %s216
        // Predicated region
        $region37: #{tpu_custom_call.1} parent=31 // pred_check
          %p218 = pneg %p67
        $region38: #{tpu_custom_call.1} parent=31 // pred_check_branch
          %220 = sbr.rel (%p218) target = $region40
        $region39: #{tpu_custom_call.1} parent=31 // pred_region
          %221 = dma.done %s214, 32
        $region40: #{tpu_custom_call.1} parent=31 // pred_fallthru
          _
        %s222 = sand.u32 %s20, 1
        %s223 = scalar_lea.sflag [#allocation5], %s222
        %s224 = sand.u32 %s80, 1
        %s225 = smul.addr %s224, 8
        %s226 = scalar_lea.vmem [#allocation6], %s225
        // Predicated region
        $region41: #{tpu_custom_call.1} parent=31 // pred_check
          %p227 = pneg %p93
        $region42: #{tpu_custom_call.1} parent=31 // pred_check_branch
          %229 = sbr.rel (%p227) target = $region44
        $region43: #{tpu_custom_call.1} parent=31 // pred_region
          %230 = dma.done %s223, 128
        $region44: #{tpu_custom_call.1} parent=31 // pred_fallthru
          _
        %s231 = sand.u32 %s28, 1
        %s232 = scalar_lea.sflag [#allocation3], %s231
        %s233 = sand.u32 %s28, 1
        %s234 = smul.addr %s233, 40
        %s235 = scalar_lea.vmem [#allocation2], %s234
        %p236 = pneg %p41
        %p237 = pneg %p38
        %s238 = sand.u32 %s20, 1
        %s239 = scalar_lea.sflag [#allocation5], %s238
        %s240 = sand.u32 %s54, 1
        %s241 = smul.addr %s240, 2
        %s242 = scalar_lea.vmem [#allocation4], %s241
        %p243 = pneg %p67
        %p244 = pneg %p64
        %s245 = sand.u32 %s20, 1
        %s246 = scalar_lea.sflag [#allocation5], %s245
        %s247 = sand.u32 %s80, 1
        %s248 = smul.addr %s247, 8
        %s249 = scalar_lea.vmem [#allocation6], %s248
        %p250 = pneg %p93
        %p251 = pneg %p90
        %p252 = pneg %p119
        %p253 = pneg %p116
        %p254 = scmp.lt.s32.totalorder %s20, 1
        %s255 = scalar_select %p254, %s20, 1
        %s256 = smul.addr %s255, 4
        %s257 = smul.addr %s256, 8
        %s258 = scalar_lea.vmem %s3, %s257
        %p259 = scmp.lt.s32.totalorder %s20, 1
        %s260 = scalar_select %p259, %s20, 1
        %s261 = smul.addr %s260, 4
        %s262 = smul.addr %s261, 8
        %s263 = scalar_lea.vmem %s3, %s262
        %v264 = vld [vmem:[%s208] sm:$0xff]
        %v265 = vld [vmem:[%s217] sm:$0x3]
        %v266 = vld [vmem:[%s226] sm:$0xff]
        %v268 = vlaneseq
        %v269 = vshrl.u32 %v268, 7
        %v270 = vsub.s32 0, %v269
        %v271 = vrot.slane %v265, %v270
        %v272 = vlaneseq
        %v273 = vshrl.u32 %v272, 7
        %v274 = vsub.s32 1, %v273
        %v275 = vrot.slane %v265, %v274
        %v279 = vcombine.high %v266, %v266
        %v281 = vmul.f32 %v271, %v266
        %v282 = vmul.f32 %v275, %v279
        %s283 = scalar_lea.vmem %s208, 8 [#allocation2]
        %v284 = vld [vmem:[%s283] sm:$0xff]
        %v285 = vmul.f32 %v284, %v264
        %v287 = vcombine.high %v285, %v285
        %vm289 = vcmask 1043456
        %v290 = vsel %vm289, %v285, 0.0
        %v291 = vrot.slane %v290, 4
        %v292 = vadd.f32 %v290, %v291
        %v293 = vrot.slane %v292, 2
        %v294 = vadd.f32 %v292, %v293
        %v295 = vrot.slane %v294, 1
        %v296 = vadd.f32 %v294, %v295
        %v297 = vsel %vm289, %v287, 0.0
        %v298 = vrot.slane %v297, 4
        %v299 = vadd.f32 %v297, %v298
        %v300 = vrot.slane %v299, 2
        %v301 = vadd.f32 %v299, %v300
        %v302 = vrot.slane %v301, 1
        %v303 = vadd.f32 %v301, %v302
        %v304 = vmul.f32 %v296, %v281
        %v305 = vmul.f32 %v303, %v282
        %vm306 = vcmask 1040384
        %v307 = vsel %vm306, %v304, 0.0
        %v308 = vsel %vm306, %v305, 0.0
        %v309 = vadd.f32 %v307, %v308
        %310 = vadd.xlane.f32.xlu0 %v309
        %v311 = vpop.xlane.xlu0 %310
        %v312 = vsel %vm306, %v281, 0.0
        %v313 = vsel %vm306, %v282, 0.0
        %v314 = vadd.f32 %v312, %v313
        %315 = vadd.xlane.f32.xlu0 %v314
        %v316 = vpop.xlane.xlu0 %315
        %vm317 = vcmp.lt.f32.partialorder %v316, 0.0001
        %v318 = vsel %vm317, 1, 0
        %v319 = vcvt.s32.f32 %v318
        %v320 = vadd.f32 %v316, %v319
        %v321 = vmul.f32 %v320, 4.0
        %v322 = vrcp.pop %v321
        %v323 = vmul.f32 %v311, %v322
        %v324 = vsel %vm317, 0.0, %v323
        %s325 = scalar_lea.vmem %s208, 16 [#allocation2]
        %v326 = vld [vmem:[%s325] sm:$0xff]
        %v327 = vmul.f32 %v326, %v264
        %v329 = vcombine.high %v327, %v327
        %v331 = vsel %vm289, %v327, 0.0
        %v332 = vrot.slane %v331, 4
        %v333 = vadd.f32 %v331, %v332
        %v334 = vrot.slane %v333, 2
        %v335 = vadd.f32 %v333, %v334
        %v336 = vrot.slane %v335, 1
        %v337 = vadd.f32 %v335, %v336
        %v338 = vsel %vm289, %v329, 0.0
        %v339 = vrot.slane %v338, 4
        %v340 = vadd.f32 %v338, %v339
        %v341 = vrot.slane %v340, 2
        %v342 = vadd.f32 %v340, %v341
        %v343 = vrot.slane %v342, 1
        %v344 = vadd.f32 %v342, %v343
        %v345 = vmul.f32 %v337, %v281
        %v346 = vmul.f32 %v344, %v282
        %vm347 = vcmask 1041409
        %v348 = vsel %vm347, %v345, 0.0
        %v349 = vsel %vm347, %v346, 0.0
        %v350 = vadd.f32 %v348, %v349
        %351 = vadd.xlane.f32.xlu0 %v350
        %v352 = vpop.xlane.xlu0 %351
        %v353 = vsel %vm347, %v281, 0.0
        %v354 = vsel %vm347, %v282, 0.0
        %v355 = vadd.f32 %v353, %v354
        %356 = vadd.xlane.f32.xlu0 %v355
        %v357 = vpop.xlane.xlu0 %356
        %vm358 = vcmp.lt.f32.partialorder %v357, 0.0001
        %v359 = vsel %vm358, 1, 0
        %v360 = vcvt.s32.f32 %v359
        %v361 = vadd.f32 %v357, %v360
        %v362 = vmul.f32 %v361, 4.0
        %v363 = vrcp.pop %v362
        %v364 = vmul.f32 %v352, %v363
        %v365 = vsel %vm358, 0.0, %v364
        %s366 = scalar_lea.vmem %s208, 24 [#allocation2]
        %v367 = vld [vmem:[%s366] sm:$0xff]
        %v368 = vmul.f32 %v367, %v264
        %v370 = vcombine.high %v368, %v368
        %v372 = vsel %vm289, %v368, 0.0
        %v373 = vrot.slane %v372, 4
        %v374 = vadd.f32 %v372, %v373
        %v375 = vrot.slane %v374, 2
        %v376 = vadd.f32 %v374, %v375
        %v377 = vrot.slane %v376, 1
        %v378 = vadd.f32 %v376, %v377
        %v379 = vsel %vm289, %v370, 0.0
        %v380 = vrot.slane %v379, 4
        %v381 = vadd.f32 %v379, %v380
        %v382 = vrot.slane %v381, 2
        %v383 = vadd.f32 %v381, %v382
        %v384 = vrot.slane %v383, 1
        %v385 = vadd.f32 %v383, %v384
        %v386 = vmul.f32 %v378, %v281
        %v387 = vmul.f32 %v385, %v282
        %vm388 = vcmask 1042434
        %v389 = vsel %vm388, %v386, 0.0
        %v390 = vsel %vm388, %v387, 0.0
        %v391 = vadd.f32 %v389, %v390
        %392 = vadd.xlane.f32.xlu0 %v391
        %v393 = vpop.xlane.xlu0 %392
        %v394 = vsel %vm388, %v281, 0.0
        %v395 = vsel %vm388, %v282, 0.0
        %v396 = vadd.f32 %v394, %v395
        %397 = vadd.xlane.f32.xlu0 %v396
        %v398 = vpop.xlane.xlu0 %397
        %vm399 = vcmp.lt.f32.partialorder %v398, 0.0001
        %v400 = vsel %vm399, 1, 0
        %v401 = vcvt.s32.f32 %v400
        %v402 = vadd.f32 %v398, %v401
        %v403 = vmul.f32 %v402, 4.0
        %v404 = vrcp.pop %v403
        %v405 = vmul.f32 %v393, %v404
        %v406 = vsel %vm399, 0.0, %v405
        %s407 = scalar_lea.vmem %s208, 32 [#allocation2]
        %v408 = vld [vmem:[%s407] sm:$0xff]
        %v409 = vmul.f32 %v408, %v264
        %v411 = vcombine.high %v409, %v409
        %v413 = vsel %vm289, %v409, 0.0
        %v414 = vrot.slane %v413, 4
        %v415 = vadd.f32 %v413, %v414
        %v416 = vrot.slane %v415, 2
        %v417 = vadd.f32 %v415, %v416
        %v418 = vrot.slane %v417, 1
        %v419 = vadd.f32 %v417, %v418
        %v420 = vsel %vm289, %v411, 0.0
        %v421 = vrot.slane %v420, 4
        %v422 = vadd.f32 %v420, %v421
        %v423 = vrot.slane %v422, 2
        %v424 = vadd.f32 %v422, %v423
        %v425 = vrot.slane %v424, 1
        %v426 = vadd.f32 %v424, %v425
        %v427 = vmul.f32 %v419, %v281
        %v428 = vmul.f32 %v426, %v282
        %vm429 = vcmask 1043459
        %v430 = vsel %vm429, %v427, 0.0
        %v431 = vsel %vm429, %v428, 0.0
        %v432 = vadd.f32 %v430, %v431
        %433 = vadd.xlane.f32.xlu0 %v432
        %v434 = vpop.xlane.xlu0 %433
        %v435 = vsel %vm429, %v281, 0.0
        %v436 = vsel %vm429, %v282, 0.0
        %v437 = vadd.f32 %v435, %v436
        %438 = vadd.xlane.f32.xlu0 %v437
        %v439 = vpop.xlane.xlu0 %438
        %vm440 = vcmp.lt.f32.partialorder %v439, 0.0001
        %v441 = vsel %vm440, 1, 0
        %v442 = vcvt.s32.f32 %v441
        %v443 = vadd.f32 %v439, %v442
        %v444 = vmul.f32 %v443, 4.0
        %v445 = vrcp.pop %v444
        %v446 = vmul.f32 %v434, %v445
        %v447 = vsel %vm440, 0.0, %v446
        %v448 = vlaneseq
        %v449 = vshrl.u32 %v448, 7
        %v450 = vsub.s32 0, %v449
        %v451 = vrot.slane %v266, %v450
        %v452 = vlaneseq
        %v453 = vshrl.u32 %v452, 7
        %v454 = vsub.s32 4, %v453
        %v455 = vrot.slane %v266, %v454
        %v458 = vmul.f32 %v324, %v451
        %v459 = vmul.f32 %v324, %v455
        %v460 = vlaneseq
        %v461 = vshrl.u32 %v460, 7
        %v462 = vsub.s32 1, %v461
        %v463 = vrot.slane %v266, %v462
        %v464 = vlaneseq
        %v465 = vshrl.u32 %v464, 7
        %v466 = vsub.s32 5, %v465
        %v467 = vrot.slane %v266, %v466
        %v470 = vmul.f32 %v365, %v463
        %v471 = vmul.f32 %v365, %v467
        %v474 = vrot.slane %v470, 1
        %v475 = vrot.slane %v471, 1
        %v478 = vmax.f32 %v458, %v474
        %v479 = vmax.f32 %v459, %v475
        %v480 = vlaneseq
        %v481 = vshrl.u32 %v480, 7
        %v482 = vsub.s32 2, %v481
        %v483 = vrot.slane %v266, %v482
        %v484 = vlaneseq
        %v485 = vshrl.u32 %v484, 7
        %v486 = vsub.s32 6, %v485
        %v487 = vrot.slane %v266, %v486
        %v490 = vmul.f32 %v406, %v483
        %v491 = vmul.f32 %v406, %v487
        %v494 = vrot.slane %v490, 2
        %v495 = vrot.slane %v491, 2
        %v498 = vmax.f32 %v478, %v494
        %v499 = vmax.f32 %v479, %v495
        %v500 = vlaneseq
        %v501 = vshrl.u32 %v500, 7
        %v502 = vsub.s32 3, %v501
        %v503 = vrot.slane %v266, %v502
        %v504 = vlaneseq
        %v505 = vshrl.u32 %v504, 7
        %v506 = vsub.s32 7, %v505
        %v507 = vrot.slane %v266, %v506
        %v510 = vmul.f32 %v447, %v503
        %v511 = vmul.f32 %v447, %v507
        %v514 = vrot.slane %v510, 3
        %v515 = vrot.slane %v511, 3
        %v518 = vmax.f32 %v498, %v514
        %v519 = vmax.f32 %v499, %v515
        %v520 = vsub.f32 0.0, %v518
        %v521 = vsub.f32 0.0, %v519
        %v522 = vmul.f32 %v520, 1.442695
        %v523 = vpow.pop %v522
        %v524 = vmul.f32 %v521, 1.442695
        %v525 = vpow.pop %v524
        %v526 = vmul.f32 %v324, 1.442695
        %v527 = vpow.pop %v526
        %v528 = vmul.f32 %v527, %v523
        %v529 = vmul.f32 %v527, %v525
        %v530 = vmul.f32 %v528, %v451
        %v531 = vmul.f32 %v529, %v455
        %v532 = vmul.f32 %v365, 1.442695
        %v533 = vpow.pop %v532
        %v536 = vrot.slane %v523, 7
        %v537 = vrot.slane %v525, 7
        %v540 = vmul.f32 %v533, %v536
        %v541 = vmul.f32 %v533, %v537
        %v542 = vmul.f32 %v540, %v463
        %v543 = vmul.f32 %v541, %v467
        %v546 = vrot.slane %v542, 1
        %v547 = vrot.slane %v543, 1
        %v550 = vadd.f32 %v530, %v546
        %v551 = vadd.f32 %v531, %v547
        %v552 = vmul.f32 %v406, 1.442695
        %v553 = vpow.pop %v552
        %v554 = vrot.slane %v523, 6
        %v555 = vrot.slane %v525, 6
        %v558 = vmul.f32 %v553, %v554
        %v559 = vmul.f32 %v553, %v555
        %v560 = vmul.f32 %v558, %v483
        %v561 = vmul.f32 %v559, %v487
        %v564 = vrot.slane %v560, 2
        %v565 = vrot.slane %v561, 2
        %v568 = vadd.f32 %v550, %v564
        %v569 = vadd.f32 %v551, %v565
        %v570 = vmul.f32 %v447, 1.442695
        %v571 = vpow.pop %v570
        %v572 = vrot.slane %v523, 5
        %v573 = vrot.slane %v525, 5
        %v576 = vmul.f32 %v571, %v572
        %v577 = vmul.f32 %v571, %v573
        %v578 = vmul.f32 %v576, %v503
        %v579 = vmul.f32 %v577, %v507
        %v582 = vrot.slane %v578, 3
        %v583 = vrot.slane %v579, 3
        %v586 = vadd.f32 %v568, %v582
        %v587 = vadd.f32 %v569, %v583
        %vm588 = vcmp.lt.f32.partialorder %v586, 0.0001
        %vm589 = vcmp.lt.f32.partialorder %v587, 0.0001
        %v590 = vsel %vm588, 1, 0
        %v591 = vsel %vm589, 1, 0
        %v592 = vcvt.s32.f32 %v590
        %v593 = vcvt.s32.f32 %v591
        %v594 = vadd.f32 %v586, %v592
        %v595 = vadd.f32 %v587, %v593
        %v596 = vrcp.pop %v594
        %v597 = vmul.f32 1.0, %v596
        %v598 = vrcp.pop %v595
        %v599 = vmul.f32 1.0, %v598
        %v600 = vmul.f32 %v530, %v597
        %v601 = vmul.f32 %v531, %v599
        %v602 = vlaneseq
        %v603 = vshrl.u32 %v602, 7
        %v604 = vsub.s32 0, %v603
        %v605 = vrot.slane %v600, %v604
        %v606 = vlaneseq
        %v607 = vshrl.u32 %v606, 7
        %v608 = vsub.s32 0, %v607
        %v609 = vrot.slane %v601, %v608
        %v612 = vcombine.low %v605, %v609
        %v614 = vmul.f32 %v284, %v612
        %v617 = vrot.slane %v597, 7
        %v618 = vrot.slane %v599, 7
        %v621 = vmul.f32 %v542, %v617
        %v622 = vmul.f32 %v543, %v618
        %v623 = vlaneseq
        %v624 = vshrl.u32 %v623, 7
        %v625 = vsub.s32 1, %v624
        %v626 = vrot.slane %v621, %v625
        %v627 = vlaneseq
        %v628 = vshrl.u32 %v627, 7
        %v629 = vsub.s32 1, %v628
        %v630 = vrot.slane %v622, %v629
        %v633 = vcombine.low %v626, %v630
        %v635 = vmul.f32 %v326, %v633
        %v636 = vadd.f32 %v614, %v635
        %v639 = vrot.slane %v621, 1
        %v640 = vrot.slane %v622, 1
        %v643 = vadd.f32 %v600, %v639
        %v644 = vadd.f32 %v601, %v640
        %v645 = vrot.slane %v597, 6
        %v646 = vrot.slane %v599, 6
        %v649 = vmul.f32 %v560, %v645
        %v650 = vmul.f32 %v561, %v646
        %v651 = vlaneseq
        %v652 = vshrl.u32 %v651, 7
        %v653 = vsub.s32 2, %v652
        %v654 = vrot.slane %v649, %v653
        %v655 = vlaneseq
        %v656 = vshrl.u32 %v655, 7
        %v657 = vsub.s32 2, %v656
        %v658 = vrot.slane %v650, %v657
        %v661 = vcombine.low %v654, %v658
        %v663 = vmul.f32 %v367, %v661
        %v664 = vadd.f32 %v636, %v663
        %v667 = vrot.slane %v649, 2
        %v668 = vrot.slane %v650, 2
        %v671 = vadd.f32 %v643, %v667
        %v672 = vadd.f32 %v644, %v668
        %v673 = vrot.slane %v597, 5
        %v674 = vrot.slane %v599, 5
        %v677 = vmul.f32 %v578, %v673
        %v678 = vmul.f32 %v579, %v674
        %v679 = vlaneseq
        %v680 = vshrl.u32 %v679, 7
        %v681 = vsub.s32 3, %v680
        %v682 = vrot.slane %v677, %v681
        %v683 = vlaneseq
        %v684 = vshrl.u32 %v683, 7
        %v685 = vsub.s32 3, %v684
        %v686 = vrot.slane %v678, %v685
        %v689 = vcombine.low %v682, %v686
        %v691 = vmul.f32 %v408, %v689
        %v692 = vadd.f32 %v664, %v691
        %v695 = vrot.slane %v677, 3
        %v696 = vrot.slane %v678, 3
        %v699 = vadd.f32 %v671, %v695
        %v700 = vadd.f32 %v672, %v696
        %v702 = vcombine.high %v264, %v264
        %704 = vst [vmem:[%s263] sm:$0xf] %v264
        %705 = vst [vmem:[%s263 + $0x8] sm:$0xf] %v702
        %v707 = vcombine.low %v692, %v692
        %709 = vst [vmem:[%s263] sm:$0xf0] %v707
        %710 = vst [vmem:[%s263 + $0x8] sm:$0xf0] %v692
        %v711 = vsub.f32 1.0, %v699
        %v712 = vsub.f32 1.0, %v700
        %v715 = vcombine.low %v711, %v712
        %v717 = vunpack.c.l.s4 1966171168
        %v718 = vunpack.c.0.s8 %v717
        %v719 = vlaneseq
        %v720 = vshrl.u32 %v719, 7
        %v721 = vsub.s32 %v718, %v720
        %v722 = vrot.slane %v715, %v721
        %v724 = vunpack.c.l.s4 1966171168
        %v725 = vunpack.c.0.s8 %v724
        %v726 = vlaneseq
        %v727 = vshrl.u32 %v726, 7
        %v728 = vsub.s32 %v725, %v727
        %v729 = vrot.slane %v722, %v728
        %v731 = vlaneseq
        %vm732 = vcmp.ge.s32.totalorder %v731, 0
        %vm733 = vcmp.lt.s32.totalorder %v731, 256
        %vm734 = vmand %vm732, %vm733
        %s735 = scalar_lea.vmem %s263, 16
        %736 = vst.msk [vmem:[%s735] ss:$8 sm:$0x3] %vm734, %v729
        %737 = vst.msk [vmem:[%s735] ss:$8 sm:$0x0] %vm734, %v729
        %p738 = scmp.lt.s32.totalorder %s20, 1
        %s739 = scalar_select %p738, %s20, 1
        %s740 = smul.addr %s739, 4
        %s741 = smul.addr %s740, 8
        %s742 = scalar_lea.vmem %s3, %s741
        // Predicated region
        $region45: #{tpu_custom_call.1} parent=31 // pred_check
          %p743 = pneg %p116
        $region46: #{tpu_custom_call.1} parent=31 // pred_check_branch
          %745 = sbr.rel (%p743) target = $region48
        $region47: #{tpu_custom_call.1} parent=31 // pred_region
          _
        $region48: #{tpu_custom_call.1} parent=31 // pred_fallthru
          _
      $region32: #{tpu_custom_call.1} parent=5 // pred_fallthru
        _
      %p746 = scmp.le.s32.totalorder 2, %s15
      // Predicated region
      $region49: #{tpu_custom_call.1} parent=5 // pred_check
        %p747 = pneg %p746
      $region50: #{tpu_custom_call.1} parent=5 // pred_check_branch
        %749 = sbr.rel (%p747) target = $region52
      $region51: #{tpu_custom_call.1} parent=5 // pred_region
        %s750 = ssub.s32 %s15, 2
        // Predicated region
        $region53: #{tpu_custom_call.1} parent=51 // pred_check
          %p751 = pneg %p122
        $region54: #{tpu_custom_call.1} parent=51 // pred_check_branch
          %753 = sbr.rel (%p751) target = $region56
        $region55: #{tpu_custom_call.1} parent=51 // pred_region
          %p754 = scmp.lt.s32.totalorder %s21, 1
          %s755 = scalar_select %p754, %s21, 1
          %s756 = smul.addr %s755, 4
          %s757 = smul.addr %s756, 8
          %s758 = scalar_lea.vmem %s3, %s757
        $region56: #{tpu_custom_call.1} parent=51 // pred_fallthru
          _
      $region52: #{tpu_custom_call.1} parent=5 // pred_fallthru
        _
    $region6: #{tpu_custom_call.1} parent=1 // loop_footer
      %s19 = sadd.s32 1, %s15
    $region7: #{tpu_custom_call.1} parent=1 // loop_footer_branch
      %14 = sbr.rel target = $region3
    $region8: #{tpu_custom_call.1} parent=1 // loop_exit
      _
    %759 = vsyncpa [#allocation3], 1
    %s760 = scalar_lea.sflag [#allocation3], 1
    %761 = vsyncpa %s760, 1
    %762 = vsyncpa [#allocation5], 1
    %s763 = scalar_lea.sflag [#allocation5], 1
    %764 = vsyncpa %s763, 1

</llo_original>
